<compile_context>
chip_gen: v6e
topology: v6e:2x2x1
jax: 0.10.0
libtpu: 0.0.40
codegen_flags: <defaults>
</compile_context>

<pallas_src>
import jax
import jax.numpy as jnp
import numpy as np
from jax.experimental import pallas as pl
from jax.experimental.pallas import tpu as pltpu

C1, C2, KW = 16, 32, 3   # conv1 out-ch, conv2 out-ch, kernel width


# ------------------------------ fused kernel --------------------------------

def make_fused_kernel(L, H, num_layers, offsets):
    L2, L4 = L // 2, L // 4
    N1, N2 = L * C1, L2 * C2

    def cell(g):
        # PyTorch gate order i, f, g, o.  h0 = c0 = 0 => W_hh term and f*c0 = 0.
        i = jax.nn.sigmoid(g[:, 0:H])
        c = jnp.tanh(g[:, 2 * H:3 * H])
        o = jax.nn.sigmoid(g[:, 3 * H:4 * H])
        return o * jnp.tanh(i * c)

    def kernel(x_ref, w_ref, b_ref, out_ref):
        x = x_ref[...]                                            # (Bp, L)

        # conv1 + ReLU: one matmul, "same" padding folded into M1
        o1 = offsets[0]
        h1 = jnp.maximum(
            jnp.dot(x, w_ref[o1:o1 + L, :],
                    preferred_element_type=jnp.float32) + b_ref[0:1, :], 0.0)
        # pool1: even/odd positions live in the two lane halves
        p1 = jnp.maximum(h1[:, 0:N1 // 2], h1[:, N1 // 2:N1])     # (Bp, L2*C1)

        # conv2 + ReLU: one matmul over the (j,c)-ordered pooled lanes
        o2 = offsets[1]
        h2 = jnp.maximum(
            jnp.dot(p1, w_ref[o2:o2 + L2 * C1, :],
                    preferred_element_type=jnp.float32) + b_ref[1:2, :], 0.0)
        # pool2
        p2 = jnp.maximum(h2[:, 0:N2 // 2], h2[:, N2 // 2:N2])     # (Bp, L4*C2)

        # LSTM layer 0: fwd+bwd merged, one (Bp,128)@(128,8H) matmul
        o0 = offsets[2]
        g0 = jnp.dot(p2, w_ref[o0:o0 + L4 * C2, :],
                     preferred_element_type=jnp.float32) + b_ref[2:3, :]
        h_f = cell(g0[:, 0:4 * H])
        h_b = cell(g0[:, 4 * H:8 * H])

        # LSTM layers >= 1: fwd/bwd weight halves -> no concat, no VMEM trip
        for layer in range(1, num_layers):
            of = offsets[3 + 2 * (layer - 1)]
            ob = offsets[3 + 2 * (layer - 1) + 1]
            gl = (jnp.dot(h_f, w_ref[of:of + H, :],
                          preferred_element_type=jnp.float32)
                  + jnp.dot(h_b, w_ref[ob:ob + H, :],
                            preferred_element_type=jnp.float32)
                  + b_ref[2 + layer:3 + layer, :])
            h_f = cell(gl[:, 0:4 * H])
            h_b = cell(gl[:, 4 * H:8 * H])

        # fc + sigmoid (lane-padded output; wrapper slices back)
        of, ob = offsets[-2], offsets[-1]
        y = (jnp.dot(h_f, w_ref[of:of + H, :], preferred_element_type=jnp.float32)
             + jnp.dot(h_b, w_ref[ob:ob + H, :], preferred_element_type=jnp.float32)
             + b_ref[num_layers + 2:num_layers + 3, :])
        out_ref[...] = jax.nn.sigmoid(y)

    return kernel


# -------------------------- one-time weight packing --------------------------

def pack_params(params, input_size, hidden, num_layers, output_size):
    """Pack all weights into one lane-dense slab + one bias slab (run once)."""
    L, H = input_size, hidden
    L2, L4 = L // 2, L // 4
    N1, N2, NG = L * C1, L2 * C2, 8 * H
    W_COLS = max(N1, N2, NG, output_size)
    W_COLS = ((W_COLS + 127) // 128) * 128

    def pad_cols(a):
        a = np.asarray(a, np.float32)
        return np.pad(a, ((0, 0), (0, W_COLS - a.shape[1])))

    w1 = np.asarray(params['conv1_w'], np.float32)          # (16, 1, 3)  OIK
    w2 = np.asarray(params['conv2_w'], np.float32)          # (32, 16, 3) OIK

    # conv1 -> matmul; output col(l,o) = (l%2)*N1/2 + (l//2)*C1 + o
    M1 = np.zeros((L, W_COLS), np.float32)
    for l in range(L):
        col = (l % 2) * (N1 // 2) + (l // 2) * C1
        for k in range(KW):
            i = l + k - 1
            if 0 <= i < L:
                M1[i, col:col + C1] = w1[:, 0, k]

    # conv2 -> matmul over pool1's (j,c)-ordered lanes; output col(j,o) likewise
    M2 = np.zeros((L2 * C1, W_COLS), np.float32)
    for j in range(L2):
        col = (j % 2) * (N2 // 2) + (j // 2) * C2
        for k in range(KW):
            jp = j + k - 1
            if 0 <= jp < L2:
                M2[jp * C1:(jp + 1) * C1, col:col + C2] = w2[:, :, k].T

    def merged(layer):
        qf, qb = params['lstm'][(layer, 0)], params['lstm'][(layer, 1)]
        W = np.concatenate([np.asarray(qf['w_ih']).T, np.asarray(qb['w_ih']).T], 1)
        b = np.concatenate([np.asarray(qf['b_ih']) + np.asarray(qf['b_hh']),
                            np.asarray(qb['b_ih']) + np.asarray(qb['b_hh'])])
        return W.astype(np.float32), b.astype(np.float32)

    # layer 0: absorb PyTorch's channel-major flatten (feature f = o*L4 + m)
    # and pool2's (m,o) lane ordering into one (L4*C2, 8H) weight.
    W0, b0 = merged(0)                                      # (C2*L4, 8H)
    W0f = pad_cols(W0.reshape(C2, L4, NG).transpose(1, 0, 2).reshape(L4 * C2, NG))

    blocks = [M1, M2, W0f]
    brows = [pad_cols(np.tile(np.asarray(params['conv1_b'], np.float32), L)[None, :]),
             pad_cols(np.tile(np.asarray(params['conv2_b'], np.float32), L2)[None, :]),
             pad_cols(b0[None, :])]

    for layer in range(1, num_layers):
        Wl, bl = merged(layer)                              # (2H, 8H)
        Wl = pad_cols(Wl)
        blocks += [Wl[:H], Wl[H:]]                          # fwd / bwd halves
        brows.append(pad_cols(bl[None, :]))

    Wfc = pad_cols(np.asarray(params['fc_w'], np.float32).T)   # (2H, W_COLS)
    blocks += [Wfc[:H], Wfc[H:]]
    brows.append(pad_cols(np.asarray(params['fc_b'], np.float32)[None, :]))

    offsets, padded, row = [], [], 0
    for blk in blocks:                                      # 8-row align each block
        offsets.append(row)
        r = blk.shape[0]
        rp = ((r + 7) // 8) * 8
        if rp != r:
            blk = np.pad(blk, ((0, rp - r), (0, 0)))
        padded.append(blk)
        row += rp
    w_slab = jnp.asarray(np.concatenate(padded, axis=0))    # (rows, W_COLS)

    b = np.concatenate(brows, axis=0)
    bp = ((b.shape[0] + 7) // 8) * 8
    b_slab = jnp.asarray(np.pad(b, ((0, bp - b.shape[0]), (0, 0))))
    return w_slab, b_slab, tuple(offsets)


# --------------------------------- wrapper -----------------------------------

def cnn_bilstm1_forward(x, packed, input_size, hidden, num_layers, output_size):
    w_slab, b_slab, offsets = packed
    B = x.shape[0]
    L = input_size
    Bp = max(8, ((B + 7) // 8) * 8)                         # sublane-pad batch
    xf = x.reshape(B, L).astype(jnp.float32)                # (B, 1, L) -> (B, L)
    xf = jnp.pad(xf, ((0, Bp - B), (0, 0)))

    kernel = make_fused_kernel(L, hidden, num_layers, offsets)
    vmem = pl.BlockSpec(memory_space=pltpu.MemorySpace.VMEM)
    out = pl.pallas_call(
        kernel,
        out_shape=jax.ShapeDtypeStruct((Bp, w_slab.shape[1]), jnp.float32),
        in_specs=[vmem, vmem, vmem],
        out_specs=vmem,
    )(xf, w_slab, b_slab)
    return out[:B, :output_size]


# --------------------------- params & reference ------------------------------

def init_params(key, input_size, hidden, num_layers, output_size):
    F = 32 * (input_size // 4)
    keys = iter(jax.random.split(key, 64))

    def rnd(shape, scale=0.3):
        return (scale * jax.random.normal(next(keys), shape)).astype(jnp.float32)

    p = {
        'conv1_w': rnd((16, 1, 3)),   # PyTorch OIK layout
        'conv1_b': rnd((16,)),
        'conv2_w': rnd((32, 16, 3)),
        'conv2_b': rnd((32,)),
        'fc_w': rnd((output_size, 2 * hidden)),
        'fc_b': rnd((output_size,)),
        'lstm': {},
    }
    for l in range(num_layers):
        in_f = F if l == 0 else 2 * hidden
        for d in range(2):
            p['lstm'][(l, d)] = dict(
                w_ih=rnd((4 * hidden, in_f)),
                w_hh=rnd((4 * hidden, hidden)),
                b_ih=rnd((4 * hidden,)),
                b_hh=rnd((4 * hidden,)),
            )
    return p


def reference_forward(x, params, hidden, num_layers):
    # pure-JAX reference mirroring the PyTorch forward (full LSTM cell math).
    B = x.shape[0]
    H = hidden
    y = jax.lax.conv_general_dilated(x, params['conv1_w'], (1,), [(1, 1)],
                                     dimension_numbers=('NCH', 'OIH', 'NCH'))
    y = jax.nn.relu(y + params['conv1_b'][None, :, None])
    y = y.reshape(B, 16, -1, 2).max(axis=-1)
    y = jax.lax.conv_general_dilated(y, params['conv2_w'], (1,), [(1, 1)],
                                     dimension_numbers=('NCH', 'OIH', 'NCH'))
    y = jax.nn.relu(y + params['conv2_b'][None, :, None])
    y = y.reshape(B, 32, -1, 2).max(axis=-1)
    inp = y.reshape(B, -1)                     # seq_len = 1
    for l in range(num_layers):
        outs = []
        for d in range(2):
            q = params['lstm'][(l, d)]
            h0 = jnp.zeros((B, H), jnp.float32)
            c0 = jnp.zeros((B, H), jnp.float32)
            gates = inp @ q['w_ih'].T + q['b_ih'] + h0 @ q['w_hh'].T + q['b_hh']
            i = jax.nn.sigmoid(gates[:, 0:H])
            f = jax.nn.sigmoid(gates[:, H:2 * H])
            g = jnp.tanh(gates[:, 2 * H:3 * H])
            o = jax.nn.sigmoid(gates[:, 3 * H:4 * H])
            c = f * c0 + i * g
            outs.append(o * jnp.tanh(c))
        inp = jnp.concatenate(outs, axis=-1)
    return jax.nn.sigmoid(inp @ params['fc_w'].T + params['fc_b'])


if __name__ == "__main__":
    B, INPUT_SIZE, HIDDEN, NUM_LAYERS, OUTPUT_SIZE = 2, 16, 32, 2, 4
    key = jax.random.PRNGKey(0)
    k_param, k_x = jax.random.split(key)
    params = init_params(k_param, INPUT_SIZE, HIDDEN, NUM_LAYERS, OUTPUT_SIZE)
    x = jax.random.normal(k_x, (B, 1, INPUT_SIZE), dtype=jnp.float32)

    # one-time weight packing (static), then the fused single-kernel forward
    packed = pack_params(params, INPUT_SIZE, HIDDEN, NUM_LAYERS, OUTPUT_SIZE)
    out = cnn_bilstm1_forward(x, packed, INPUT_SIZE, HIDDEN, NUM_LAYERS, OUTPUT_SIZE)
    out = jax.block_until_ready(out)

    ref = reference_forward(x, params, HIDDEN, NUM_LAYERS)
    assert out.shape == (B, OUTPUT_SIZE)
    assert jnp.allclose(out, ref, atol=5e-3, rtol=5e-3), (out, ref)
    print("KERNEL_OK")
</pallas_src>

<mosaic_0001>
module attributes {stable_mosaic.version = 11 : i64} {
  func.func @kernel(%arg0: memref<8x16xf32, #tpu.memory_space<vmem>>, %arg1: memref<400x256xf32, #tpu.memory_space<vmem>>, %arg2: memref<8x256xf32, #tpu.memory_space<vmem>>, %arg3: memref<8x256xf32, #tpu.memory_space<vmem>>) attributes {dimension_semantics = [], scalar_prefetch = 0 : i64, scratch_operands = 0 : i64, tpu.core_type = #tpu.core_type<tc>} {
    %c0 = arith.constant 0 : index
    %c0_0 = arith.constant 0 : index
    %0 = vector.load %arg0[%c0, %c0_0] : memref<8x16xf32, #tpu.memory_space<vmem>>, vector<8x16xf32>
    %c0_1 = arith.constant 0 : index
    %c0_2 = arith.constant 0 : index
    %1 = vector.load %arg1[%c0_1, %c0_2] : memref<400x256xf32, #tpu.memory_space<vmem>>, vector<16x256xf32>
    %cst = arith.constant dense<0.000000e+00> : vector<8x256xf32>
    %2 = tpu.matmul %0, %1, %cst {dimension_numbers = #tpu.dot_dimension_numbers<[1], [0], [0], [1], [0, 0, 1, 1], [], []>} : vector<8x16xf32>, vector<16x256xf32>, vector<8x256xf32> -> vector<8x256xf32>
    %c0_3 = arith.constant 0 : index
    %c0_4 = arith.constant 0 : index
    %3 = vector.load %arg2[%c0_3, %c0_4] : memref<8x256xf32, #tpu.memory_space<vmem>>, vector<1x256xf32>
    %4 = vector.broadcast %3 : vector<1x256xf32> to vector<8x256xf32>
    %5 = arith.addf %2, %4 : vector<8x256xf32>
    %cst_5 = arith.constant 0.000000e+00 : f32
    %6 = vector.broadcast %cst_5 : f32 to vector<8x256xf32>
    %7 = arith.maximumf %5, %6 : vector<8x256xf32>
    %8 = vector.extract_strided_slice %7 {offsets = [0, 0], sizes = [8, 128], strides = [1, 1]} : vector<8x256xf32> to vector<8x128xf32>
    %9 = vector.extract_strided_slice %7 {offsets = [0, 128], sizes = [8, 128], strides = [1, 1]} : vector<8x256xf32> to vector<8x128xf32>
    %10 = arith.maximumf %8, %9 : vector<8x128xf32>
    %c16 = arith.constant 16 : index
    %c0_6 = arith.constant 0 : index
    %11 = vector.load %arg1[%c16, %c0_6] : memref<400x256xf32, #tpu.memory_space<vmem>>, vector<128x256xf32>
    %cst_7 = arith.constant dense<0.000000e+00> : vector<8x256xf32>
    %12 = tpu.matmul %10, %11, %cst_7 {dimension_numbers = #tpu.dot_dimension_numbers<[1], [0], [0], [1], [0, 0, 1, 1], [], []>} : vector<8x128xf32>, vector<128x256xf32>, vector<8x256xf32> -> vector<8x256xf32>
    %c1 = arith.constant 1 : index
    %c0_8 = arith.constant 0 : index
    %13 = vector.load %arg2[%c1, %c0_8] : memref<8x256xf32, #tpu.memory_space<vmem>>, vector<1x256xf32>
    %14 = vector.broadcast %13 : vector<1x256xf32> to vector<8x256xf32>
    %15 = arith.addf %12, %14 : vector<8x256xf32>
    %cst_9 = arith.constant 0.000000e+00 : f32
    %16 = vector.broadcast %cst_9 : f32 to vector<8x256xf32>
    %17 = arith.maximumf %15, %16 : vector<8x256xf32>
    %18 = vector.extract_strided_slice %17 {offsets = [0, 0], sizes = [8, 128], strides = [1, 1]} : vector<8x256xf32> to vector<8x128xf32>
    %19 = vector.extract_strided_slice %17 {offsets = [0, 128], sizes = [8, 128], strides = [1, 1]} : vector<8x256xf32> to vector<8x128xf32>
    %20 = arith.maximumf %18, %19 : vector<8x128xf32>
    %c144 = arith.constant 144 : index
    %c0_10 = arith.constant 0 : index
    %21 = vector.load %arg1[%c144, %c0_10] : memref<400x256xf32, #tpu.memory_space<vmem>>, vector<128x256xf32>
    %cst_11 = arith.constant dense<0.000000e+00> : vector<8x256xf32>
    %22 = tpu.matmul %20, %21, %cst_11 {dimension_numbers = #tpu.dot_dimension_numbers<[1], [0], [0], [1], [0, 0, 1, 1], [], []>} : vector<8x128xf32>, vector<128x256xf32>, vector<8x256xf32> -> vector<8x256xf32>
    %c2 = arith.constant 2 : index
    %c0_12 = arith.constant 0 : index
    %23 = vector.load %arg2[%c2, %c0_12] : memref<8x256xf32, #tpu.memory_space<vmem>>, vector<1x256xf32>
    %24 = vector.broadcast %23 : vector<1x256xf32> to vector<8x256xf32>
    %25 = arith.addf %22, %24 : vector<8x256xf32>
    %26 = vector.extract_strided_slice %25 {offsets = [0, 0], sizes = [8, 128], strides = [1, 1]} : vector<8x256xf32> to vector<8x128xf32>
    %27 = vector.extract_strided_slice %26 {offsets = [0, 0], sizes = [8, 32], strides = [1, 1]} : vector<8x128xf32> to vector<8x32xf32>
    %28 = arith.negf %27 : vector<8x32xf32>
    %29 = math.exp %28 : vector<8x32xf32>
    %cst_13 = arith.constant 1.000000e+00 : f32
    %30 = vector.broadcast %cst_13 : f32 to vector<8x32xf32>
    %31 = arith.addf %30, %29 : vector<8x32xf32>
    %32 = arith.divf %30, %31 : vector<8x32xf32>
    %33 = vector.extract_strided_slice %26 {offsets = [0, 64], sizes = [8, 32], strides = [1, 1]} : vector<8x128xf32> to vector<8x32xf32>
    %34 = math.tanh %33 : vector<8x32xf32>
    %35 = vector.extract_strided_slice %26 {offsets = [0, 96], sizes = [8, 32], strides = [1, 1]} : vector<8x128xf32> to vector<8x32xf32>
    %36 = arith.negf %35 : vector<8x32xf32>
    %37 = math.exp %36 : vector<8x32xf32>
    %cst_14 = arith.constant 1.000000e+00 : f32
    %38 = vector.broadcast %cst_14 : f32 to vector<8x32xf32>
    %39 = arith.addf %38, %37 : vector<8x32xf32>
    %40 = arith.divf %38, %39 : vector<8x32xf32>
    %41 = arith.mulf %32, %34 : vector<8x32xf32>
    %42 = math.tanh %41 : vector<8x32xf32>
    %43 = arith.mulf %40, %42 : vector<8x32xf32>
    %44 = vector.extract_strided_slice %25 {offsets = [0, 128], sizes = [8, 128], strides = [1, 1]} : vector<8x256xf32> to vector<8x128xf32>
    %45 = vector.extract_strided_slice %44 {offsets = [0, 0], sizes = [8, 32], strides = [1, 1]} : vector<8x128xf32> to vector<8x32xf32>
    %46 = arith.negf %45 : vector<8x32xf32>
    %47 = math.exp %46 : vector<8x32xf32>
    %cst_15 = arith.constant 1.000000e+00 : f32
    %48 = vector.broadcast %cst_15 : f32 to vector<8x32xf32>
    %49 = arith.addf %48, %47 : vector<8x32xf32>
    %50 = arith.divf %48, %49 : vector<8x32xf32>
    %51 = vector.extract_strided_slice %44 {offsets = [0, 64], sizes = [8, 32], strides = [1, 1]} : vector<8x128xf32> to vector<8x32xf32>
    %52 = math.tanh %51 : vector<8x32xf32>
    %53 = vector.extract_strided_slice %44 {offsets = [0, 96], sizes = [8, 32], strides = [1, 1]} : vector<8x128xf32> to vector<8x32xf32>
    %54 = arith.negf %53 : vector<8x32xf32>
    %55 = math.exp %54 : vector<8x32xf32>
    %cst_16 = arith.constant 1.000000e+00 : f32
    %56 = vector.broadcast %cst_16 : f32 to vector<8x32xf32>
    %57 = arith.addf %56, %55 : vector<8x32xf32>
    %58 = arith.divf %56, %57 : vector<8x32xf32>
    %59 = arith.mulf %50, %52 : vector<8x32xf32>
    %60 = math.tanh %59 : vector<8x32xf32>
    %61 = arith.mulf %58, %60 : vector<8x32xf32>
    %c272 = arith.constant 272 : index
    %c0_17 = arith.constant 0 : index
    %62 = vector.load %arg1[%c272, %c0_17] : memref<400x256xf32, #tpu.memory_space<vmem>>, vector<32x256xf32>
    %cst_18 = arith.constant dense<0.000000e+00> : vector<8x256xf32>
    %63 = tpu.matmul %43, %62, %cst_18 {dimension_numbers = #tpu.dot_dimension_numbers<[1], [0], [0], [1], [0, 0, 1, 1], [], []>} : vector<8x32xf32>, vector<32x256xf32>, vector<8x256xf32> -> vector<8x256xf32>
    %c304 = arith.constant 304 : index
    %c0_19 = arith.constant 0 : index
    %64 = vector.load %arg1[%c304, %c0_19] : memref<400x256xf32, #tpu.memory_space<vmem>>, vector<32x256xf32>
    %cst_20 = arith.constant dense<0.000000e+00> : vector<8x256xf32>
    %65 = tpu.matmul %61, %64, %cst_20 {dimension_numbers = #tpu.dot_dimension_numbers<[1], [0], [0], [1], [0, 0, 1, 1], [], []>} : vector<8x32xf32>, vector<32x256xf32>, vector<8x256xf32> -> vector<8x256xf32>
    %66 = arith.addf %63, %65 : vector<8x256xf32>
    %c3 = arith.constant 3 : index
    %c0_21 = arith.constant 0 : index
    %67 = vector.load %arg2[%c3, %c0_21] : memref<8x256xf32, #tpu.memory_space<vmem>>, vector<1x256xf32>
    %68 = vector.broadcast %67 : vector<1x256xf32> to vector<8x256xf32>
    %69 = arith.addf %66, %68 : vector<8x256xf32>
    %70 = vector.extract_strided_slice %69 {offsets = [0, 0], sizes = [8, 128], strides = [1, 1]} : vector<8x256xf32> to vector<8x128xf32>
    %71 = vector.extract_strided_slice %70 {offsets = [0, 0], sizes = [8, 32], strides = [1, 1]} : vector<8x128xf32> to vector<8x32xf32>
    %72 = arith.negf %71 : vector<8x32xf32>
    %73 = math.exp %72 : vector<8x32xf32>
    %cst_22 = arith.constant 1.000000e+00 : f32
    %74 = vector.broadcast %cst_22 : f32 to vector<8x32xf32>
    %75 = arith.addf %74, %73 : vector<8x32xf32>
    %76 = arith.divf %74, %75 : vector<8x32xf32>
    %77 = vector.extract_strided_slice %70 {offsets = [0, 64], sizes = [8, 32], strides = [1, 1]} : vector<8x128xf32> to vector<8x32xf32>
    %78 = math.tanh %77 : vector<8x32xf32>
    %79 = vector.extract_strided_slice %70 {offsets = [0, 96], sizes = [8, 32], strides = [1, 1]} : vector<8x128xf32> to vector<8x32xf32>
    %80 = arith.negf %79 : vector<8x32xf32>
    %81 = math.exp %80 : vector<8x32xf32>
    %cst_23 = arith.constant 1.000000e+00 : f32
    %82 = vector.broadcast %cst_23 : f32 to vector<8x32xf32>
    %83 = arith.addf %82, %81 : vector<8x32xf32>
    %84 = arith.divf %82, %83 : vector<8x32xf32>
    %85 = arith.mulf %76, %78 : vector<8x32xf32>
    %86 = math.tanh %85 : vector<8x32xf32>
    %87 = arith.mulf %84, %86 : vector<8x32xf32>
    %88 = vector.extract_strided_slice %69 {offsets = [0, 128], sizes = [8, 128], strides = [1, 1]} : vector<8x256xf32> to vector<8x128xf32>
    %89 = vector.extract_strided_slice %88 {offsets = [0, 0], sizes = [8, 32], strides = [1, 1]} : vector<8x128xf32> to vector<8x32xf32>
    %90 = arith.negf %89 : vector<8x32xf32>
    %91 = math.exp %90 : vector<8x32xf32>
    %cst_24 = arith.constant 1.000000e+00 : f32
    %92 = vector.broadcast %cst_24 : f32 to vector<8x32xf32>
    %93 = arith.addf %92, %91 : vector<8x32xf32>
    %94 = arith.divf %92, %93 : vector<8x32xf32>
    %95 = vector.extract_strided_slice %88 {offsets = [0, 64], sizes = [8, 32], strides = [1, 1]} : vector<8x128xf32> to vector<8x32xf32>
    %96 = math.tanh %95 : vector<8x32xf32>
    %97 = vector.extract_strided_slice %88 {offsets = [0, 96], sizes = [8, 32], strides = [1, 1]} : vector<8x128xf32> to vector<8x32xf32>
    %98 = arith.negf %97 : vector<8x32xf32>
    %99 = math.exp %98 : vector<8x32xf32>
    %cst_25 = arith.constant 1.000000e+00 : f32
    %100 = vector.broadcast %cst_25 : f32 to vector<8x32xf32>
    %101 = arith.addf %100, %99 : vector<8x32xf32>
    %102 = arith.divf %100, %101 : vector<8x32xf32>
    %103 = arith.mulf %94, %96 : vector<8x32xf32>
    %104 = math.tanh %103 : vector<8x32xf32>
    %105 = arith.mulf %102, %104 : vector<8x32xf32>
    %c336 = arith.constant 336 : index
    %c0_26 = arith.constant 0 : index
    %106 = vector.load %arg1[%c336, %c0_26] : memref<400x256xf32, #tpu.memory_space<vmem>>, vector<32x256xf32>
    %cst_27 = arith.constant dense<0.000000e+00> : vector<8x256xf32>
    %107 = tpu.matmul %87, %106, %cst_27 {dimension_numbers = #tpu.dot_dimension_numbers<[1], [0], [0], [1], [0, 0, 1, 1], [], []>} : vector<8x32xf32>, vector<32x256xf32>, vector<8x256xf32> -> vector<8x256xf32>
    %c368 = arith.constant 368 : index
    %c0_28 = arith.constant 0 : index
    %108 = vector.load %arg1[%c368, %c0_28] : memref<400x256xf32, #tpu.memory_space<vmem>>, vector<32x256xf32>
    %cst_29 = arith.constant dense<0.000000e+00> : vector<8x256xf32>
    %109 = tpu.matmul %105, %108, %cst_29 {dimension_numbers = #tpu.dot_dimension_numbers<[1], [0], [0], [1], [0, 0, 1, 1], [], []>} : vector<8x32xf32>, vector<32x256xf32>, vector<8x256xf32> -> vector<8x256xf32>
    %110 = arith.addf %107, %109 : vector<8x256xf32>
    %c4 = arith.constant 4 : index
    %c0_30 = arith.constant 0 : index
    %111 = vector.load %arg2[%c4, %c0_30] : memref<8x256xf32, #tpu.memory_space<vmem>>, vector<1x256xf32>
    %112 = vector.broadcast %111 : vector<1x256xf32> to vector<8x256xf32>
    %113 = arith.addf %110, %112 : vector<8x256xf32>
    %114 = arith.negf %113 : vector<8x256xf32>
    %115 = math.exp %114 : vector<8x256xf32>
    %cst_31 = arith.constant 1.000000e+00 : f32
    %116 = vector.broadcast %cst_31 : f32 to vector<8x256xf32>
    %117 = arith.addf %116, %115 : vector<8x256xf32>
    %118 = arith.divf %116, %117 : vector<8x256xf32>
    %c0_32 = arith.constant 0 : index
    %c0_33 = arith.constant 0 : index
    %119 = vector.load %arg3[%c0_32, %c0_33] : memref<8x256xf32, #tpu.memory_space<vmem>>, vector<8x256xf32>
    tpu.vector_store %arg3[%c0_32, %c0_33], %118 {strides = array<i32>} : memref<8x256xf32, #tpu.memory_space<vmem>>, vector<8x256xf32>,
    return
  }
}

</mosaic_0001>

<llo_original>
// kernel: tpu_custom_call.1
$region0: #{tpu_custom_call.1}
  #allocation0 [shape = 'u32[]', space=smem, size = 0x4, offset = 0x4, fixed_abs, tag = 'smem constant byte address 0x4 - core index']
  #allocation1 [shape = 'u32[144,128]{1,0:T(1,128)}', space=vmem, size = 0x12000, scoped, tag = 'internal scratch']
  %s0 = inlined_call_operand.hbm [shape: f32[8,16], index: 0, kind: input, shape index: {}]
  %s1 = inlined_call_operand.hbm [shape: f32[400,256], index: 1, kind: input, shape index: {}]
  %s2 = inlined_call_operand.hbm [shape: f32[8,256], index: 2, kind: input, shape index: {}]
  %s3 = inlined_call_operand.hbm [shape: f32[8,256], index: 3, kind: output, shape index: {}]
  %s4 = sld [smem:[#allocation0]]
  $region34: #{tpu_custom_call.1} parent=0
    _
  %s6 = ssub.s32 1, %s4
  %s7 = scalar_select 0, %s6, %s4
  $region1: #{tpu_custom_call.1} parent=0
    #allocation2 [shape = 'u8[4096]{0}', space=vmem, size = 0x1000, scoped, tag = 'input window, operand 0, single buffered']
    #allocation3 [shape = 's32[1]{0}', space=sflag, size = 0x4, scoped, tag = 'scoped memory for tpu_custom_call.1']
    #allocation4 [shape = 's32[1]{0}', space=sflag, size = 0x4, scoped, tag = 'scoped memory for tpu_custom_call.1']
    #allocation5 [shape = 'u8[409600]{0}', space=vmem, size = 0x64000, scoped, tag = 'input window, operand 1, single buffered']
    #allocation6 [shape = 's32[1]{0}', space=sflag, size = 0x4, scoped, tag = 'scoped memory for tpu_custom_call.1']
    #allocation7 [shape = 'u8[8192]{0}', space=vmem, size = 0x2000, scoped, tag = 'input window, operand 2, single buffered']
    #allocation8 [shape = 'u8[8192]{0}', space=vmem, size = 0x2000, scoped, tag = 'output window, operand 0, single buffered']
    %8 = vsyncpa [#allocation3], 0
    %9 = vsyncpa [#allocation6], 0
    %10 = vsyncpa [#allocation4], 0
    // Predicated region
    $region2: #{tpu_custom_call.1} parent=1 // pred_check
      _
    $region3: #{tpu_custom_call.1} parent=1 // pred_check_branch
      %12 = sbr.rel (0) target = $region5
    $region4: #{tpu_custom_call.1} parent=1 // pred_region
      %s14 = ssub.s32 128, 128
      %15 = vsyncadd [#allocation3], %s14
      %s17 = sshll.u32 [#allocation2], 4
      %s18 = int_to_ptr.vmem [resolvable:$true] %s17
      %20 = dma.hbm_to_vmem [thread:$0]  %s0, 128, %s18, [#allocation3]
    $region5: #{tpu_custom_call.1} parent=1 // pred_fallthru
      _
    // Predicated region
    $region6: #{tpu_custom_call.1} parent=1 // pred_check
      _
    $region7: #{tpu_custom_call.1} parent=1 // pred_check_branch
      %22 = sbr.rel (0) target = $region9
    $region8: #{tpu_custom_call.1} parent=1 // pred_region
      %s24 = ssub.s32 12800, 12800
      %25 = vsyncadd [#allocation6], %s24
      %s26 = sshll.u32 [#allocation5], 4
      %s27 = int_to_ptr.vmem [resolvable:$true] %s26
      %32 = dma.hbm_to_vmem [thread:$0]  %s1, 12800, %s27, [#allocation6], 256, 256, 16
    $region9: #{tpu_custom_call.1} parent=1 // pred_fallthru
      _
    // Predicated region
    $region10: #{tpu_custom_call.1} parent=1 // pred_check
      _
    $region11: #{tpu_custom_call.1} parent=1 // pred_check_branch
      %34 = sbr.rel (0) target = $region13
    $region12: #{tpu_custom_call.1} parent=1 // pred_region
      %s36 = ssub.s32 256, 256
      %37 = vsyncadd [#allocation6], %s36
      %s39 = sshll.u32 [#allocation7], 4
      %s40 = int_to_ptr.vmem [resolvable:$true] %s39
      %42 = dma.hbm_to_vmem [thread:$0]  %s2, 256, %s40, [#allocation6]
    $region13: #{tpu_custom_call.1} parent=1 // pred_fallthru
      _
    // Predicated region
    $region14: #{tpu_custom_call.1} parent=1 // pred_check
      _
    $region15: #{tpu_custom_call.1} parent=1 // pred_check_branch
      %44 = sbr.rel (0) target = $region17
    $region16: #{tpu_custom_call.1} parent=1 // pred_region
      %45 = dma.done [#allocation3], 128
    $region17: #{tpu_custom_call.1} parent=1 // pred_fallthru
      _
    // Predicated region
    $region18: #{tpu_custom_call.1} parent=1 // pred_check
      _
    $region19: #{tpu_custom_call.1} parent=1 // pred_check_branch
      %47 = sbr.rel (0) target = $region21
    $region20: #{tpu_custom_call.1} parent=1 // pred_region
      %48 = dma.done [#allocation6], 12800
    $region21: #{tpu_custom_call.1} parent=1 // pred_fallthru
      _
    // Predicated region
    $region22: #{tpu_custom_call.1} parent=1 // pred_check
      _
    $region23: #{tpu_custom_call.1} parent=1 // pred_check_branch
      %50 = sbr.rel (0) target = $region25
    $region24: #{tpu_custom_call.1} parent=1 // pred_region
      %51 = dma.done [#allocation6], 256
    $region25: #{tpu_custom_call.1} parent=1 // pred_fallthru
      _
    %v52 = vld [vmem:[#allocation2] sm:$0xff]
    %v53 = vld [vmem:[#allocation5] sm:$0xff]
    %v54 = vld [vmem:[#allocation5 + $0x8] sm:$0xff]
    %v55 = vld [vmem:[#allocation5 + $0x10] sm:$0xff]
    %v56 = vld [vmem:[#allocation5 + $0x18] sm:$0xff]
    %v57 = vld [vmem:[#allocation7] ss:$8 sm:$0x3]
    %v59 = vlaneseq
    %v60 = vshrl.u32 %v59, 7
    %v61 = vsub.s32 0, %v60
    %v62 = vrot.slane %v57, %v61
    %v63 = vlaneseq
    %v64 = vshrl.u32 %v63, 7
    %v65 = vsub.s32 1, %v64
    %v66 = vrot.slane %v57, %v65
    %vm69 = vcmask 130048
    %v71 = vsel %vm69, %v52, 0
    %73 = vmatprep.subr.mxu0 0.0
    %74 = vmatpush1.msra.mxu0 0.0
    %75 = vmatprep.subr.mxu0 0.0
    %76 = vmatpush1.msra.mxu0 0.0
    %77 = vmatprep.subr.mxu0 0.0
    %78 = vmatpush1.msra.mxu0 0.0
    %79 = vmatprep.subr.mxu0 0.0
    %80 = vmatpush1.msra.mxu0 0.0
    %81 = vmatprep.subr.mxu0 0.0
    %82 = vmatpush1.msra.mxu0 0.0
    %83 = vmatprep.subr.mxu0 0.0
    %84 = vmatpush1.msra.mxu0 0.0
    %85 = vmatprep.subr.mxu0 0.0
    %86 = vmatpush1.msra.mxu0 0.0
    %87 = vmatprep.subr.mxu0 0.0
    %88 = vmatpush1.msra.mxu0 0.0
    %89 = vmatprep.subr.mxu0 0.0
    %90 = vmatpush1.msra.mxu0 0.0
    %91 = vmatprep.subr.mxu0 0.0
    %92 = vmatpush1.msra.mxu0 0.0
    %93 = vmatprep.subr.mxu0 0.0
    %94 = vmatpush1.msra.mxu0 0.0
    %95 = vmatprep.subr.mxu0 0.0
    %96 = vmatpush1.msra.mxu0 0.0
    %97 = vmatprep.subr.mxu0 0.0
    %98 = vmatpush1.msra.mxu0 0.0
    %99 = vmatprep.subr.mxu0 0.0
    %100 = vmatpush1.msra.mxu0 0.0
    %101 = vmatprep.subr.mxu0 %v56
    %102 = vmatpush1.msra.mxu0 %v55
    %103 = vmatprep.subr.mxu0 %v54
    %104 = vmatpush1.msra.mxu0 %v53
    %105 = vmatprep.subr.mxu0 0.0
    %106 = vmatpush2.msra.mxu0 0.0
    %107 = vmatprep.subr.mxu0 0.0
    %108 = vmatpush2.msra.mxu0 0.0
    %109 = vmatprep.subr.mxu0 0.0
    %110 = vmatpush2.msra.mxu0 0.0
    %111 = vmatprep.subr.mxu0 0.0
    %112 = vmatpush2.msra.mxu0 0.0
    %113 = vmatprep.subr.mxu0 0.0
    %114 = vmatpush2.msra.mxu0 0.0
    %115 = vmatprep.subr.mxu0 0.0
    %116 = vmatpush2.msra.mxu0 0.0
    %117 = vmatprep.subr.mxu0 0.0
    %118 = vmatpush2.msra.mxu0 0.0
    %119 = vmatprep.subr.mxu0 0.0
    %120 = vmatpush2.msra.mxu0 0.0
    %121 = vmatprep.subr.mxu0 0.0
    %122 = vmatpush2.msra.mxu0 0.0
    %123 = vmatprep.subr.mxu0 0.0
    %124 = vmatpush2.msra.mxu0 0.0
    %125 = vmatprep.subr.mxu0 0.0
    %126 = vmatpush2.msra.mxu0 0.0
    %127 = vmatprep.subr.mxu0 0.0
    %128 = vmatpush2.msra.mxu0 0.0
    %129 = vmatprep.subr.mxu0 0.0
    %130 = vmatpush2.msra.mxu0 0.0
    %131 = vmatprep.subr.mxu0 0.0
    %132 = vmatpush2.msra.mxu0 0.0
    %133 = vmatprep.subr.mxu0 0.0
    %134 = vmatpush2.msra.mxu0 0.0
    %135 = vmatprep.subr.mxu0 0.0
    %136 = vmatpush2.msra.mxu0 0.0
    %137 = vmatprep.mubr.f32.mxu0 0.0
    %138 = vmatmul.mubr.f32.gmra.mxu0 %v71
    %v139 = vpop.f32.mrf.mxu0
    %v140 = vadd.f32 %v62, %v139
    %v141 = vpop.f32.mrf.mxu0
    %v142 = vadd.f32 %v66, %v141
    %143 = vdwg.mxu0
    %v144 = vmax.f32 %v140, 0.0
    %v145 = vmax.f32 %v142, 0.0
    %v146 = vmax.f32 %v144, %v145
    %v147 = vld [vmem:[#allocation5 + $0x20] sm:$0xff]
    %v148 = vld [vmem:[#allocation5 + $0x28] sm:$0xff]
    %v149 = vld [vmem:[#allocation5 + $0x30] sm:$0xff]
    %v150 = vld [vmem:[#allocation5 + $0x38] sm:$0xff]
    %v151 = vld [vmem:[#allocation5 + $0x40] sm:$0xff]
    %v152 = vld [vmem:[#allocation5 + $0x48] sm:$0xff]
    %v153 = vld [vmem:[#allocation5 + $0x50] sm:$0xff]
    %v154 = vld [vmem:[#allocation5 + $0x58] sm:$0xff]
    %v155 = vld [vmem:[#allocation5 + $0x60] sm:$0xff]
    %v156 = vld [vmem:[#allocation5 + $0x68] sm:$0xff]
    %v157 = vld [vmem:[#allocation5 + $0x70] sm:$0xff]
    %v158 = vld [vmem:[#allocation5 + $0x78] sm:$0xff]
    %v159 = vld [vmem:[#allocation5 + $0x80] sm:$0xff]
    %v160 = vld [vmem:[#allocation5 + $0x88] sm:$0xff]
    %v161 = vld [vmem:[#allocation5 + $0x90] sm:$0xff]
    %v162 = vld [vmem:[#allocation5 + $0x98] sm:$0xff]
    %v163 = vld [vmem:[#allocation5 + $0xa0] sm:$0xff]
    %v164 = vld [vmem:[#allocation5 + $0xa8] sm:$0xff]
    %v165 = vld [vmem:[#allocation5 + $0xb0] sm:$0xff]
    %v166 = vld [vmem:[#allocation5 + $0xb8] sm:$0xff]
    %v167 = vld [vmem:[#allocation5 + $0xc0] sm:$0xff]
    %v168 = vld [vmem:[#allocation5 + $0xc8] sm:$0xff]
    %v169 = vld [vmem:[#allocation5 + $0xd0] sm:$0xff]
    %v170 = vld [vmem:[#allocation5 + $0xd8] sm:$0xff]
    %v171 = vld [vmem:[#allocation5 + $0xe0] sm:$0xff]
    %v172 = vld [vmem:[#allocation5 + $0xe8] sm:$0xff]
    %v173 = vld [vmem:[#allocation5 + $0xf0] sm:$0xff]
    %v174 = vld [vmem:[#allocation5 + $0xf8] sm:$0xff]
    %v175 = vld [vmem:[#allocation5 + $0x100] sm:$0xff]
    %v176 = vld [vmem:[#allocation5 + $0x108] sm:$0xff]
    %v177 = vld [vmem:[#allocation5 + $0x110] sm:$0xff]
    %v178 = vld [vmem:[#allocation5 + $0x118] sm:$0xff]
    %s179 = scalar_lea.vmem [#allocation7], 1
    %v180 = vld [vmem:[%s179] ss:$8 sm:$0x3]
    %v182 = vlaneseq
    %v183 = vshrl.u32 %v182, 7
    %v184 = vsub.s32 0, %v183
    %v185 = vrot.slane %v180, %v184
    %v186 = vlaneseq
    %v187 = vshrl.u32 %v186, 7
    %v188 = vsub.s32 1, %v187
    %v189 = vrot.slane %v180, %v188
    %192 = vmatprep.subr.mxu0 %v178
    %193 = vmatpush1.msra.mxu0 %v177
    %194 = vmatprep.subr.mxu0 %v176
    %195 = vmatpush1.msra.mxu0 %v175
    %196 = vmatprep.subr.mxu0 %v174
    %197 = vmatpush1.msra.mxu0 %v173
    %198 = vmatprep.subr.mxu0 %v172
    %199 = vmatpush1.msra.mxu0 %v171
    %200 = vmatprep.subr.mxu0 %v170
    %201 = vmatpush1.msra.mxu0 %v169
    %202 = vmatprep.subr.mxu0 %v168
    %203 = vmatpush1.msra.mxu0 %v167
    %204 = vmatprep.subr.mxu0 %v166
    %205 = vmatpush1.msra.mxu0 %v165
    %206 = vmatprep.subr.mxu0 %v164
    %207 = vmatpush1.msra.mxu0 %v163
    %208 = vmatprep.subr.mxu0 %v162
    %209 = vmatpush1.msra.mxu0 %v161
    %210 = vmatprep.subr.mxu0 %v160
    %211 = vmatpush1.msra.mxu0 %v159
    %212 = vmatprep.subr.mxu0 %v158
    %213 = vmatpush1.msra.mxu0 %v157
    %214 = vmatprep.subr.mxu0 %v156
    %215 = vmatpush1.msra.mxu0 %v155
    %216 = vmatprep.subr.mxu0 %v154
    %217 = vmatpush1.msra.mxu0 %v153
    %218 = vmatprep.subr.mxu0 %v152
    %219 = vmatpush1.msra.mxu0 %v151
    %220 = vmatprep.subr.mxu0 %v150
    %221 = vmatpush1.msra.mxu0 %v149
    %222 = vmatprep.subr.mxu0 %v148
    %223 = vmatpush1.msra.mxu0 %v147
    %224 = vmatprep.subr.mxu0 0.0
    %225 = vmatpush2.msra.mxu0 0.0
    %226 = vmatprep.subr.mxu0 0.0
    %227 = vmatpush2.msra.mxu0 0.0
    %228 = vmatprep.subr.mxu0 0.0
    %229 = vmatpush2.msra.mxu0 0.0
    %230 = vmatprep.subr.mxu0 0.0
    %231 = vmatpush2.msra.mxu0 0.0
    %232 = vmatprep.subr.mxu0 0.0
    %233 = vmatpush2.msra.mxu0 0.0
    %234 = vmatprep.subr.mxu0 0.0
    %235 = vmatpush2.msra.mxu0 0.0
    %236 = vmatprep.subr.mxu0 0.0
    %237 = vmatpush2.msra.mxu0 0.0
    %238 = vmatprep.subr.mxu0 0.0
    %239 = vmatpush2.msra.mxu0 0.0
    %240 = vmatprep.subr.mxu0 0.0
    %241 = vmatpush2.msra.mxu0 0.0
    %242 = vmatprep.subr.mxu0 0.0
    %243 = vmatpush2.msra.mxu0 0.0
    %244 = vmatprep.subr.mxu0 0.0
    %245 = vmatpush2.msra.mxu0 0.0
    %246 = vmatprep.subr.mxu0 0.0
    %247 = vmatpush2.msra.mxu0 0.0
    %248 = vmatprep.subr.mxu0 0.0
    %249 = vmatpush2.msra.mxu0 0.0
    %250 = vmatprep.subr.mxu0 0.0
    %251 = vmatpush2.msra.mxu0 0.0
    %252 = vmatprep.subr.mxu0 0.0
    %253 = vmatpush2.msra.mxu0 0.0
    %254 = vmatprep.subr.mxu0 0.0
    %255 = vmatpush2.msra.mxu0 0.0
    %256 = vmatprep.mubr.f32.mxu0 0.0
    %257 = vmatmul.mubr.f32.gmra.mxu0 %v146
    %v258 = vpop.f32.mrf.mxu0
    %v259 = vadd.f32 %v185, %v258
    %v260 = vpop.f32.mrf.mxu0
    %v261 = vadd.f32 %v189, %v260
    %262 = vdwg.mxu0
    %v263 = vmax.f32 %v259, 0.0
    %v264 = vmax.f32 %v261, 0.0
    %v265 = vmax.f32 %v263, %v264
    %v266 = vld [vmem:[#allocation5 + $0x120] sm:$0xff]
    %v267 = vld [vmem:[#allocation5 + $0x128] sm:$0xff]
    %v268 = vld [vmem:[#allocation5 + $0x130] sm:$0xff]
    %v269 = vld [vmem:[#allocation5 + $0x138] sm:$0xff]
    %v270 = vld [vmem:[#allocation5 + $0x140] sm:$0xff]
    %v271 = vld [vmem:[#allocation5 + $0x148] sm:$0xff]
    %v272 = vld [vmem:[#allocation5 + $0x150] sm:$0xff]
    %v273 = vld [vmem:[#allocation5 + $0x158] sm:$0xff]
    %v274 = vld [vmem:[#allocation5 + $0x160] sm:$0xff]
    %v275 = vld [vmem:[#allocation5 + $0x168] sm:$0xff]
    %v276 = vld [vmem:[#allocation5 + $0x170] sm:$0xff]
    %v277 = vld [vmem:[#allocation5 + $0x178] sm:$0xff]
    %v278 = vld [vmem:[#allocation5 + $0x180] sm:$0xff]
    %v279 = vld [vmem:[#allocation5 + $0x188] sm:$0xff]
    %v280 = vld [vmem:[#allocation5 + $0x190] sm:$0xff]
    %v281 = vld [vmem:[#allocation5 + $0x198] sm:$0xff]
    %v282 = vld [vmem:[#allocation5 + $0x1a0] sm:$0xff]
    %v283 = vld [vmem:[#allocation5 + $0x1a8] sm:$0xff]
    %v284 = vld [vmem:[#allocation5 + $0x1b0] sm:$0xff]
    %v285 = vld [vmem:[#allocation5 + $0x1b8] sm:$0xff]
    %v286 = vld [vmem:[#allocation5 + $0x1c0] sm:$0xff]
    %v287 = vld [vmem:[#allocation5 + $0x1c8] sm:$0xff]
    %v288 = vld [vmem:[#allocation5 + $0x1d0] sm:$0xff]
    %v289 = vld [vmem:[#allocation5 + $0x1d8] sm:$0xff]
    %v290 = vld [vmem:[#allocation5 + $0x1e0] sm:$0xff]
    %v291 = vld [vmem:[#allocation5 + $0x1e8] sm:$0xff]
    %v292 = vld [vmem:[#allocation5 + $0x1f0] sm:$0xff]
    %v293 = vld [vmem:[#allocation5 + $0x1f8] sm:$0xff]
    %v294 = vld [vmem:[#allocation5 + $0x200] sm:$0xff]
    %v295 = vld [vmem:[#allocation5 + $0x208] sm:$0xff]
    %v296 = vld [vmem:[#allocation5 + $0x210] sm:$0xff]
    %v297 = vld [vmem:[#allocation5 + $0x218] sm:$0xff]
    %s298 = scalar_lea.vmem [#allocation7], 2
    %v299 = vld [vmem:[%s298] ss:$8 sm:$0x3]
    %v301 = vlaneseq
    %v302 = vshrl.u32 %v301, 7
    %v303 = vsub.s32 0, %v302
    %v304 = vrot.slane %v299, %v303
    %v305 = vlaneseq
    %v306 = vshrl.u32 %v305, 7
    %v307 = vsub.s32 1, %v306
    %v308 = vrot.slane %v299, %v307
    %311 = vmatprep.subr.mxu0 %v297
    %312 = vmatpush1.msra.mxu0 %v296
    %313 = vmatprep.subr.mxu0 %v295
    %314 = vmatpush1.msra.mxu0 %v294
    %315 = vmatprep.subr.mxu0 %v293
    %316 = vmatpush1.msra.mxu0 %v292
    %317 = vmatprep.subr.mxu0 %v291
    %318 = vmatpush1.msra.mxu0 %v290
    %319 = vmatprep.subr.mxu0 %v289
    %320 = vmatpush1.msra.mxu0 %v288
    %321 = vmatprep.subr.mxu0 %v287
    %322 = vmatpush1.msra.mxu0 %v286
    %323 = vmatprep.subr.mxu0 %v285
    %324 = vmatpush1.msra.mxu0 %v284
    %325 = vmatprep.subr.mxu0 %v283
    %326 = vmatpush1.msra.mxu0 %v282
    %327 = vmatprep.subr.mxu0 %v281
    %328 = vmatpush1.msra.mxu0 %v280
    %329 = vmatprep.subr.mxu0 %v279
    %330 = vmatpush1.msra.mxu0 %v278
    %331 = vmatprep.subr.mxu0 %v277
    %332 = vmatpush1.msra.mxu0 %v276
    %333 = vmatprep.subr.mxu0 %v275
    %334 = vmatpush1.msra.mxu0 %v274
    %335 = vmatprep.subr.mxu0 %v273
    %336 = vmatpush1.msra.mxu0 %v272
    %337 = vmatprep.subr.mxu0 %v271
    %338 = vmatpush1.msra.mxu0 %v270
    %339 = vmatprep.subr.mxu0 %v269
    %340 = vmatpush1.msra.mxu0 %v268
    %341 = vmatprep.subr.mxu0 %v267
    %342 = vmatpush1.msra.mxu0 %v266
    %343 = vmatprep.subr.mxu0 0.0
    %344 = vmatpush2.msra.mxu0 0.0
    %345 = vmatprep.subr.mxu0 0.0
    %346 = vmatpush2.msra.mxu0 0.0
    %347 = vmatprep.subr.mxu0 0.0
    %348 = vmatpush2.msra.mxu0 0.0
    %349 = vmatprep.subr.mxu0 0.0
    %350 = vmatpush2.msra.mxu0 0.0
    %351 = vmatprep.subr.mxu0 0.0
    %352 = vmatpush2.msra.mxu0 0.0
    %353 = vmatprep.subr.mxu0 0.0
    %354 = vmatpush2.msra.mxu0 0.0
    %355 = vmatprep.subr.mxu0 0.0
    %356 = vmatpush2.msra.mxu0 0.0
    %357 = vmatprep.subr.mxu0 0.0
    %358 = vmatpush2.msra.mxu0 0.0
    %359 = vmatprep.subr.mxu0 0.0
    %360 = vmatpush2.msra.mxu0 0.0
    %361 = vmatprep.subr.mxu0 0.0
    %362 = vmatpush2.msra.mxu0 0.0
    %363 = vmatprep.subr.mxu0 0.0
    %364 = vmatpush2.msra.mxu0 0.0
    %365 = vmatprep.subr.mxu0 0.0
    %366 = vmatpush2.msra.mxu0 0.0
    %367 = vmatprep.subr.mxu0 0.0
    %368 = vmatpush2.msra.mxu0 0.0
    %369 = vmatprep.subr.mxu0 0.0
    %370 = vmatpush2.msra.mxu0 0.0
    %371 = vmatprep.subr.mxu0 0.0
    %372 = vmatpush2.msra.mxu0 0.0
    %373 = vmatprep.subr.mxu0 0.0
    %374 = vmatpush2.msra.mxu0 0.0
    %375 = vmatprep.mubr.f32.mxu0 0.0
    %376 = vmatmul.mubr.f32.gmra.mxu0 %v265
    %v377 = vpop.f32.mrf.mxu0
    %v378 = vadd.f32 %v304, %v377
    %v379 = vpop.f32.mrf.mxu0
    %v380 = vadd.f32 %v308, %v379
    %381 = vdwg.mxu0
    %v382 = vxor.u32 %v378, 2147483648
    %v383 = vmul.f32 %v382, 1.442695
    %v384 = vpow.pop %v383
    %v385 = vadd.f32 %v384, 1.0
    %v386 = vrcp.pop %v385
    %v387 = vmul.f32 1.0, %v386
    %v388 = vtanh.pop %v378
    %390 = vrot.lane.b32.xlu0 %v388, 64
    %v391 = vpop.permute.xlu0 %390
    %v393 = vmul.f32 %v387, %v391
    %v394 = vtanh.pop %v393
    %396 = vrot.lane.b32.xlu0 %v394, 96
    %v397 = vpop.permute.xlu0 %396
    %v399 = vmul.f32 %v387, %v397
    %v400 = vxor.u32 %v380, 2147483648
    %v401 = vmul.f32 %v400, 1.442695
    %v402 = vpow.pop %v401
    %v403 = vadd.f32 %v402, 1.0
    %v404 = vrcp.pop %v403
    %v405 = vmul.f32 1.0, %v404
    %v406 = vtanh.pop %v380
    %408 = vrot.lane.b32.xlu0 %v406, 64
    %v409 = vpop.permute.xlu0 %408
    %v411 = vmul.f32 %v405, %v409
    %v412 = vtanh.pop %v411
    %414 = vrot.lane.b32.xlu0 %v412, 96
    %v415 = vpop.permute.xlu0 %414
    %v417 = vmul.f32 %v405, %v415
    %v418 = vld [vmem:[#allocation5 + $0x220] sm:$0xff]
    %v419 = vld [vmem:[#allocation5 + $0x228] sm:$0xff]
    %v420 = vld [vmem:[#allocation5 + $0x230] sm:$0xff]
    %v421 = vld [vmem:[#allocation5 + $0x238] sm:$0xff]
    %v422 = vld [vmem:[#allocation5 + $0x240] sm:$0xff]
    %v423 = vld [vmem:[#allocation5 + $0x248] sm:$0xff]
    %v424 = vld [vmem:[#allocation5 + $0x250] sm:$0xff]
    %v425 = vld [vmem:[#allocation5 + $0x258] sm:$0xff]
    %v426 = vld [vmem:[#allocation5 + $0x260] sm:$0xff]
    %v427 = vld [vmem:[#allocation5 + $0x268] sm:$0xff]
    %v428 = vld [vmem:[#allocation5 + $0x270] sm:$0xff]
    %v429 = vld [vmem:[#allocation5 + $0x278] sm:$0xff]
    %v430 = vld [vmem:[#allocation5 + $0x280] sm:$0xff]
    %v431 = vld [vmem:[#allocation5 + $0x288] sm:$0xff]
    %v432 = vld [vmem:[#allocation5 + $0x290] sm:$0xff]
    %v433 = vld [vmem:[#allocation5 + $0x298] sm:$0xff]
    %435 = vrot.lane.b32.xlu0 %v417, 32
    %v436 = vpop.permute.xlu0 %435
    %vm437 = vcmask 261120
    %v438 = vsel %vm437, %v436, 0
    %440 = vmatprep.subr.mxu0 0.0
    %441 = vmatpush1.msra.mxu0 0.0
    %442 = vmatprep.subr.mxu0 0.0
    %443 = vmatpush1.msra.mxu0 0.0
    %444 = vmatprep.subr.mxu0 0.0
    %445 = vmatpush1.msra.mxu0 0.0
    %446 = vmatprep.subr.mxu0 0.0
    %447 = vmatpush1.msra.mxu0 0.0
    %448 = vmatprep.subr.mxu0 0.0
    %449 = vmatpush1.msra.mxu0 0.0
    %450 = vmatprep.subr.mxu0 0.0
    %451 = vmatpush1.msra.mxu0 0.0
    %452 = vmatprep.subr.mxu0 0.0
    %453 = vmatpush1.msra.mxu0 0.0
    %454 = vmatprep.subr.mxu0 0.0
    %455 = vmatpush1.msra.mxu0 0.0
    %456 = vmatprep.subr.mxu0 0.0
    %457 = vmatpush1.msra.mxu0 0.0
    %458 = vmatprep.subr.mxu0 0.0
    %459 = vmatpush1.msra.mxu0 0.0
    %460 = vmatprep.subr.mxu0 0.0
    %461 = vmatpush1.msra.mxu0 0.0
    %462 = vmatprep.subr.mxu0 0.0
    %463 = vmatpush1.msra.mxu0 0.0
    %464 = vmatprep.subr.mxu0 %v433
    %465 = vmatpush1.msra.mxu0 %v432
    %466 = vmatprep.subr.mxu0 %v431
    %467 = vmatpush1.msra.mxu0 %v430
    %468 = vmatprep.subr.mxu0 %v429
    %469 = vmatpush1.msra.mxu0 %v428
    %470 = vmatprep.subr.mxu0 %v427
    %471 = vmatpush1.msra.mxu0 %v426
    %472 = vmatprep.subr.mxu0 0.0
    %473 = vmatpush2.msra.mxu0 0.0
    %474 = vmatprep.subr.mxu0 0.0
    %475 = vmatpush2.msra.mxu0 0.0
    %476 = vmatprep.subr.mxu0 0.0
    %477 = vmatpush2.msra.mxu0 0.0
    %478 = vmatprep.subr.mxu0 0.0
    %479 = vmatpush2.msra.mxu0 0.0
    %480 = vmatprep.subr.mxu0 0.0
    %481 = vmatpush2.msra.mxu0 0.0
    %482 = vmatprep.subr.mxu0 0.0
    %483 = vmatpush2.msra.mxu0 0.0
    %484 = vmatprep.subr.mxu0 0.0
    %485 = vmatpush2.msra.mxu0 0.0
    %486 = vmatprep.subr.mxu0 0.0
    %487 = vmatpush2.msra.mxu0 0.0
    %488 = vmatprep.subr.mxu0 0.0
    %489 = vmatpush2.msra.mxu0 0.0
    %490 = vmatprep.subr.mxu0 0.0
    %491 = vmatpush2.msra.mxu0 0.0
    %492 = vmatprep.subr.mxu0 0.0
    %493 = vmatpush2.msra.mxu0 0.0
    %494 = vmatprep.subr.mxu0 0.0
    %495 = vmatpush2.msra.mxu0 0.0
    %496 = vmatprep.subr.mxu0 0.0
    %497 = vmatpush2.msra.mxu0 0.0
    %498 = vmatprep.subr.mxu0 0.0
    %499 = vmatpush2.msra.mxu0 0.0
    %500 = vmatprep.subr.mxu0 0.0
    %501 = vmatpush2.msra.mxu0 0.0
    %502 = vmatprep.subr.mxu0 0.0
    %503 = vmatpush2.msra.mxu0 0.0
    %504 = vmatprep.mubr.f32.mxu0 0.0
    %505 = vmatmul.mubr.f32.gmra.mxu0 %v438
    %v506 = vpop.f32.mrf.mxu0
    %v507 = vadd.f32 0.0, %v506
    %v508 = vpop.f32.mrf.mxu0
    %v509 = vadd.f32 0.0, %v508
    %510 = vdwg.mxu0
    %512 = vrot.lane.b32.xlu0 %v399, 32
    %v513 = vpop.permute.xlu0 %512
    %v514 = vsel %vm437, %v513, 0
    %516 = vmatprep.subr.mxu0 0.0
    %517 = vmatpush1.msra.mxu0 0.0
    %518 = vmatprep.subr.mxu0 0.0
    %519 = vmatpush1.msra.mxu0 0.0
    %520 = vmatprep.subr.mxu0 0.0
    %521 = vmatpush1.msra.mxu0 0.0
    %522 = vmatprep.subr.mxu0 0.0
    %523 = vmatpush1.msra.mxu0 0.0
    %524 = vmatprep.subr.mxu0 0.0
    %525 = vmatpush1.msra.mxu0 0.0
    %526 = vmatprep.subr.mxu0 0.0
    %527 = vmatpush1.msra.mxu0 0.0
    %528 = vmatprep.subr.mxu0 0.0
    %529 = vmatpush1.msra.mxu0 0.0
    %530 = vmatprep.subr.mxu0 0.0
    %531 = vmatpush1.msra.mxu0 0.0
    %532 = vmatprep.subr.mxu0 0.0
    %533 = vmatpush1.msra.mxu0 0.0
    %534 = vmatprep.subr.mxu0 0.0
    %535 = vmatpush1.msra.mxu0 0.0
    %536 = vmatprep.subr.mxu0 0.0
    %537 = vmatpush1.msra.mxu0 0.0
    %538 = vmatprep.subr.mxu0 0.0
    %539 = vmatpush1.msra.mxu0 0.0
    %540 = vmatprep.subr.mxu0 %v425
    %541 = vmatpush1.msra.mxu0 %v424
    %542 = vmatprep.subr.mxu0 %v423
    %543 = vmatpush1.msra.mxu0 %v422
    %544 = vmatprep.subr.mxu0 %v421
    %545 = vmatpush1.msra.mxu0 %v420
    %546 = vmatprep.subr.mxu0 %v419
    %547 = vmatpush1.msra.mxu0 %v418
    %548 = vmatprep.subr.mxu0 0.0
    %549 = vmatpush2.msra.mxu0 0.0
    %550 = vmatprep.subr.mxu0 0.0
    %551 = vmatpush2.msra.mxu0 0.0
    %552 = vmatprep.subr.mxu0 0.0
    %553 = vmatpush2.msra.mxu0 0.0
    %554 = vmatprep.subr.mxu0 0.0
    %555 = vmatpush2.msra.mxu0 0.0
    %556 = vmatprep.subr.mxu0 0.0
    %557 = vmatpush2.msra.mxu0 0.0
    %558 = vmatprep.subr.mxu0 0.0
    %559 = vmatpush2.msra.mxu0 0.0
    %560 = vmatprep.subr.mxu0 0.0
    %561 = vmatpush2.msra.mxu0 0.0
    %562 = vmatprep.subr.mxu0 0.0
    %563 = vmatpush2.msra.mxu0 0.0
    %564 = vmatprep.subr.mxu0 0.0
    %565 = vmatpush2.msra.mxu0 0.0
    %566 = vmatprep.subr.mxu0 0.0
    %567 = vmatpush2.msra.mxu0 0.0
    %568 = vmatprep.subr.mxu0 0.0
    %569 = vmatpush2.msra.mxu0 0.0
    %570 = vmatprep.subr.mxu0 0.0
    %571 = vmatpush2.msra.mxu0 0.0
    %572 = vmatprep.subr.mxu0 0.0
    %573 = vmatpush2.msra.mxu0 0.0
    %574 = vmatprep.subr.mxu0 0.0
    %575 = vmatpush2.msra.mxu0 0.0
    %576 = vmatprep.subr.mxu0 0.0
    %577 = vmatpush2.msra.mxu0 0.0
    %578 = vmatprep.subr.mxu0 0.0
    %579 = vmatpush2.msra.mxu0 0.0
    %580 = vmatprep.mubr.f32.mxu0 0.0
    %581 = vmatmul.mubr.f32.gmra.mxu0 %v514
    %v582 = vpop.f32.mrf.mxu0
    %v583 = vadd.f32 %v507, %v582
    %v584 = vpop.f32.mrf.mxu0
    %v585 = vadd.f32 %v509, %v584
    %586 = vdwg.mxu0
    %s587 = scalar_lea.vmem [#allocation7], 3
    %v588 = vld [vmem:[%s587] ss:$8 sm:$0x3]
    %v590 = vlaneseq
    %v591 = vshrl.u32 %v590, 7
    %v592 = vsub.s32 0, %v591
    %v593 = vrot.slane %v588, %v592
    %v594 = vlaneseq
    %v595 = vshrl.u32 %v594, 7
    %v596 = vsub.s32 1, %v595
    %v597 = vrot.slane %v588, %v596
    %v600 = vadd.f32 %v583, %v593
    %v601 = vadd.f32 %v585, %v597
    %v602 = vxor.u32 %v600, 2147483648
    %v603 = vmul.f32 %v602, 1.442695
    %v604 = vpow.pop %v603
    %v605 = vadd.f32 %v604, 1.0
    %v606 = vrcp.pop %v605
    %v607 = vmul.f32 1.0, %v606
    %v608 = vtanh.pop %v600
    %610 = vrot.lane.b32.xlu0 %v608, 64
    %v611 = vpop.permute.xlu0 %610
    %v613 = vmul.f32 %v607, %v611
    %v614 = vtanh.pop %v613
    %616 = vrot.lane.b32.xlu0 %v614, 96
    %v617 = vpop.permute.xlu0 %616
    %v619 = vmul.f32 %v607, %v617
    %v620 = vxor.u32 %v601, 2147483648
    %v621 = vmul.f32 %v620, 1.442695
    %v622 = vpow.pop %v621
    %v623 = vadd.f32 %v622, 1.0
    %v624 = vrcp.pop %v623
    %v625 = vmul.f32 1.0, %v624
    %v626 = vtanh.pop %v601
    %628 = vrot.lane.b32.xlu0 %v626, 64
    %v629 = vpop.permute.xlu0 %628
    %v631 = vmul.f32 %v625, %v629
    %v632 = vtanh.pop %v631
    %634 = vrot.lane.b32.xlu0 %v632, 96
    %v635 = vpop.permute.xlu0 %634
    %v637 = vmul.f32 %v625, %v635
    %v638 = vld [vmem:[#allocation5 + $0x2a0] sm:$0xff]
    %v639 = vld [vmem:[#allocation5 + $0x2a8] sm:$0xff]
    %v640 = vld [vmem:[#allocation5 + $0x2b0] sm:$0xff]
    %v641 = vld [vmem:[#allocation5 + $0x2b8] sm:$0xff]
    %v642 = vld [vmem:[#allocation5 + $0x2c0] sm:$0xff]
    %v643 = vld [vmem:[#allocation5 + $0x2c8] sm:$0xff]
    %v644 = vld [vmem:[#allocation5 + $0x2d0] sm:$0xff]
    %v645 = vld [vmem:[#allocation5 + $0x2d8] sm:$0xff]
    %v646 = vld [vmem:[#allocation5 + $0x2e0] sm:$0xff]
    %v647 = vld [vmem:[#allocation5 + $0x2e8] sm:$0xff]
    %v648 = vld [vmem:[#allocation5 + $0x2f0] sm:$0xff]
    %v649 = vld [vmem:[#allocation5 + $0x2f8] sm:$0xff]
    %v650 = vld [vmem:[#allocation5 + $0x300] sm:$0xff]
    %v651 = vld [vmem:[#allocation5 + $0x308] sm:$0xff]
    %v652 = vld [vmem:[#allocation5 + $0x310] sm:$0xff]
    %v653 = vld [vmem:[#allocation5 + $0x318] sm:$0xff]
    %655 = vrot.lane.b32.xlu0 %v637, 32
    %v656 = vpop.permute.xlu0 %655
    %v657 = vsel %vm437, %v656, 0
    %659 = vmatprep.subr.mxu0 0.0
    %660 = vmatpush1.msra.mxu0 0.0
    %661 = vmatprep.subr.mxu0 0.0
    %662 = vmatpush1.msra.mxu0 0.0
    %663 = vmatprep.subr.mxu0 0.0
    %664 = vmatpush1.msra.mxu0 0.0
    %665 = vmatprep.subr.mxu0 0.0
    %666 = vmatpush1.msra.mxu0 0.0
    %667 = vmatprep.subr.mxu0 0.0
    %668 = vmatpush1.msra.mxu0 0.0
    %669 = vmatprep.subr.mxu0 0.0
    %670 = vmatpush1.msra.mxu0 0.0
    %671 = vmatprep.subr.mxu0 0.0
    %672 = vmatpush1.msra.mxu0 0.0
    %673 = vmatprep.subr.mxu0 0.0
    %674 = vmatpush1.msra.mxu0 0.0
    %675 = vmatprep.subr.mxu0 0.0
    %676 = vmatpush1.msra.mxu0 0.0
    %677 = vmatprep.subr.mxu0 0.0
    %678 = vmatpush1.msra.mxu0 0.0
    %679 = vmatprep.subr.mxu0 0.0
    %680 = vmatpush1.msra.mxu0 0.0
    %681 = vmatprep.subr.mxu0 0.0
    %682 = vmatpush1.msra.mxu0 0.0
    %683 = vmatprep.subr.mxu0 %v653
    %684 = vmatpush1.msra.mxu0 %v652
    %685 = vmatprep.subr.mxu0 %v651
    %686 = vmatpush1.msra.mxu0 %v650
    %687 = vmatprep.subr.mxu0 %v649
    %688 = vmatpush1.msra.mxu0 %v648
    %689 = vmatprep.subr.mxu0 %v647
    %690 = vmatpush1.msra.mxu0 %v646
    %691 = vmatprep.subr.mxu0 0.0
    %692 = vmatpush2.msra.mxu0 0.0
    %693 = vmatprep.subr.mxu0 0.0
    %694 = vmatpush2.msra.mxu0 0.0
    %695 = vmatprep.subr.mxu0 0.0
    %696 = vmatpush2.msra.mxu0 0.0
    %697 = vmatprep.subr.mxu0 0.0
    %698 = vmatpush2.msra.mxu0 0.0
    %699 = vmatprep.subr.mxu0 0.0
    %700 = vmatpush2.msra.mxu0 0.0
    %701 = vmatprep.subr.mxu0 0.0
    %702 = vmatpush2.msra.mxu0 0.0
    %703 = vmatprep.subr.mxu0 0.0
    %704 = vmatpush2.msra.mxu0 0.0
    %705 = vmatprep.subr.mxu0 0.0
    %706 = vmatpush2.msra.mxu0 0.0
    %707 = vmatprep.subr.mxu0 0.0
    %708 = vmatpush2.msra.mxu0 0.0
    %709 = vmatprep.subr.mxu0 0.0
    %710 = vmatpush2.msra.mxu0 0.0
    %711 = vmatprep.subr.mxu0 0.0
    %712 = vmatpush2.msra.mxu0 0.0
    %713 = vmatprep.subr.mxu0 0.0
    %714 = vmatpush2.msra.mxu0 0.0
    %715 = vmatprep.subr.mxu0 0.0
    %716 = vmatpush2.msra.mxu0 0.0
    %717 = vmatprep.subr.mxu0 0.0
    %718 = vmatpush2.msra.mxu0 0.0
    %719 = vmatprep.subr.mxu0 0.0
    %720 = vmatpush2.msra.mxu0 0.0
    %721 = vmatprep.subr.mxu0 0.0
    %722 = vmatpush2.msra.mxu0 0.0
    %723 = vmatprep.mubr.f32.mxu0 0.0
    %724 = vmatmul.mubr.f32.gmra.mxu0 %v657
    %v725 = vpop.f32.mrf.mxu0
    %v726 = vadd.f32 0.0, %v725
    %v727 = vpop.f32.mrf.mxu0
    %v728 = vadd.f32 0.0, %v727
    %729 = vdwg.mxu0
    %731 = vrot.lane.b32.xlu0 %v619, 32
    %v732 = vpop.permute.xlu0 %731
    %v733 = vsel %vm437, %v732, 0
    %735 = vmatprep.subr.mxu0 0.0
    %736 = vmatpush1.msra.mxu0 0.0
    %737 = vmatprep.subr.mxu0 0.0
    %738 = vmatpush1.msra.mxu0 0.0
    %739 = vmatprep.subr.mxu0 0.0
    %740 = vmatpush1.msra.mxu0 0.0
    %741 = vmatprep.subr.mxu0 0.0
    %742 = vmatpush1.msra.mxu0 0.0
    %743 = vmatprep.subr.mxu0 0.0
    %744 = vmatpush1.msra.mxu0 0.0
    %745 = vmatprep.subr.mxu0 0.0
    %746 = vmatpush1.msra.mxu0 0.0
    %747 = vmatprep.subr.mxu0 0.0
    %748 = vmatpush1.msra.mxu0 0.0
    %749 = vmatprep.subr.mxu0 0.0
    %750 = vmatpush1.msra.mxu0 0.0
    %751 = vmatprep.subr.mxu0 0.0
    %752 = vmatpush1.msra.mxu0 0.0
    %753 = vmatprep.subr.mxu0 0.0
    %754 = vmatpush1.msra.mxu0 0.0
    %755 = vmatprep.subr.mxu0 0.0
    %756 = vmatpush1.msra.mxu0 0.0
    %757 = vmatprep.subr.mxu0 0.0
    %758 = vmatpush1.msra.mxu0 0.0
    %759 = vmatprep.subr.mxu0 %v645
    %760 = vmatpush1.msra.mxu0 %v644
    %761 = vmatprep.subr.mxu0 %v643
    %762 = vmatpush1.msra.mxu0 %v642
    %763 = vmatprep.subr.mxu0 %v641
    %764 = vmatpush1.msra.mxu0 %v640
    %765 = vmatprep.subr.mxu0 %v639
    %766 = vmatpush1.msra.mxu0 %v638
    %767 = vmatprep.subr.mxu0 0.0
    %768 = vmatpush2.msra.mxu0 0.0
    %769 = vmatprep.subr.mxu0 0.0
    %770 = vmatpush2.msra.mxu0 0.0
    %771 = vmatprep.subr.mxu0 0.0
    %772 = vmatpush2.msra.mxu0 0.0
    %773 = vmatprep.subr.mxu0 0.0
    %774 = vmatpush2.msra.mxu0 0.0
    %775 = vmatprep.subr.mxu0 0.0
    %776 = vmatpush2.msra.mxu0 0.0
    %777 = vmatprep.subr.mxu0 0.0
    %778 = vmatpush2.msra.mxu0 0.0
    %779 = vmatprep.subr.mxu0 0.0
    %780 = vmatpush2.msra.mxu0 0.0
    %781 = vmatprep.subr.mxu0 0.0
    %782 = vmatpush2.msra.mxu0 0.0
    %783 = vmatprep.subr.mxu0 0.0
    %784 = vmatpush2.msra.mxu0 0.0
    %785 = vmatprep.subr.mxu0 0.0
    %786 = vmatpush2.msra.mxu0 0.0
    %787 = vmatprep.subr.mxu0 0.0
    %788 = vmatpush2.msra.mxu0 0.0
    %789 = vmatprep.subr.mxu0 0.0
    %790 = vmatpush2.msra.mxu0 0.0
    %791 = vmatprep.subr.mxu0 0.0
    %792 = vmatpush2.msra.mxu0 0.0
    %793 = vmatprep.subr.mxu0 0.0
    %794 = vmatpush2.msra.mxu0 0.0
    %795 = vmatprep.subr.mxu0 0.0
    %796 = vmatpush2.msra.mxu0 0.0
    %797 = vmatprep.subr.mxu0 0.0
    %798 = vmatpush2.msra.mxu0 0.0
    %799 = vmatprep.mubr.f32.mxu0 0.0
    %800 = vmatmul.mubr.f32.gmra.mxu0 %v733
    %v801 = vpop.f32.mrf.mxu0
    %v802 = vadd.f32 %v726, %v801
    %v803 = vpop.f32.mrf.mxu0
    %v804 = vadd.f32 %v728, %v803
    %805 = vdwg.mxu0
    %s806 = scalar_lea.vmem [#allocation7], 4
    %v807 = vld [vmem:[%s806] ss:$8 sm:$0x3]
    %v809 = vlaneseq
    %v810 = vshrl.u32 %v809, 7
    %v811 = vsub.s32 0, %v810
    %v812 = vrot.slane %v807, %v811
    %v813 = vlaneseq
    %v814 = vshrl.u32 %v813, 7
    %v815 = vsub.s32 1, %v814
    %v816 = vrot.slane %v807, %v815
    %v819 = vadd.f32 %v802, %v812
    %v820 = vadd.f32 %v804, %v816
    %v821 = vxor.u32 %v819, 2147483648
    %v822 = vxor.u32 %v820, 2147483648
    %v823 = vmul.f32 %v821, 1.442695
    %v824 = vpow.pop %v823
    %v825 = vmul.f32 %v822, 1.442695
    %v826 = vpow.pop %v825
    %v827 = vadd.f32 %v824, 1.0
    %v828 = vadd.f32 %v826, 1.0
    %v829 = vrcp.pop %v827
    %v830 = vmul.f32 1.0, %v829
    %v831 = vrcp.pop %v828
    %v832 = vmul.f32 1.0, %v831
    %833 = vst [vmem:[#allocation8] sm:$0xff] %v830
    %834 = vst [vmem:[#allocation8 + $0x8] sm:$0xff] %v832
    // Predicated region
    $region26: #{tpu_custom_call.1} parent=1 // pred_check
      _
    $region27: #{tpu_custom_call.1} parent=1 // pred_check_branch
      %836 = sbr.rel (0) target = $region29
    $region28: #{tpu_custom_call.1} parent=1 // pred_region
      %s838 = ssub.s32 256, 256
      %839 = vsyncadd [#allocation4], %s838
      %s841 = sshll.u32 [#allocation8], 4
      %s842 = int_to_ptr.vmem [resolvable:$true] %s841
      %844 = dma.vmem_to_hbm [thread:$0]  %s842, 256, %s3, [#allocation4]
    $region29: #{tpu_custom_call.1} parent=1 // pred_fallthru
      _
    // Predicated region
    $region30: #{tpu_custom_call.1} parent=1 // pred_check
      _
    $region31: #{tpu_custom_call.1} parent=1 // pred_check_branch
      %846 = sbr.rel (0) target = $region33
    $region32: #{tpu_custom_call.1} parent=1 // pred_region
      %847 = dma.done [#allocation4], 256
    $region33: #{tpu_custom_call.1} parent=1 // pred_fallthru
      _
    %848 = vsyncpa [#allocation3], 1
    %849 = vsyncpa [#allocation6], 1
    %850 = vsyncpa [#allocation4], 1

</llo_original>
